<compile_context>
chip_gen: v7x
topology: tpu7x:2x2x1
jax: 0.10.0
libtpu: 0.0.40
codegen_flags: <defaults>
</compile_context>

<pallas_src>
import math
import functools

import jax
import jax.numpy as jnp
from jax import lax
from jax.experimental import pallas as pl
from jax.experimental.pallas import tpu as pltpu


# Scoped-VMEM request: >= default on every generation (v5e default is only 16 MiB)
# and <= half of v7x's 64 MiB physical VMEM.
_VMEM_LIMIT_BYTES = 32 * 1024 * 1024


def _vmem_capacity_bytes():
    """Per-generation physical VMEM (v5e/v6e: 128 MiB, v7x: 64 MiB)."""
    try:
        return int(pltpu.get_tpu_info().vmem_capacity_bytes)
    except Exception:  # conservative fallback
        return 64 * 1024 * 1024


# Bigger row/seq tiles amortize the ~0.35us per-step overhead (measured 63%->85%
# of HBM roofline going 256->512); back off on parts with only 64 MiB VMEM (v7x).
_TILE_TARGET = 512 if _vmem_capacity_bytes() >= 128 * 1024 * 1024 else 256


def _pick_tile(n, target=_TILE_TARGET):
    """Largest tile <= target that divides n (keeps grids exact)."""
    if n <= target:
        return n
    for t in (1024, 512, 256, 128, 64, 32, 16, 8):
        if t <= target and n % t == 0:
            return t
    return n


# ----------------------------------------------------------------------------
# Row-tiled dense (Linear) kernel -- used for the q projection
# ----------------------------------------------------------------------------

def _dense_kernel(x_ref, w_ref, b_ref, o_ref):
    # bf16 MXU operands, f32 accumulation.
    acc = jnp.dot(x_ref[...].astype(jnp.bfloat16), w_ref[...],
                  preferred_element_type=jnp.float32)
    o_ref[...] = (acc + b_ref[...]).astype(o_ref.dtype)


def dense(x, w_bf16, b, out_dtype=jnp.bfloat16):
    """y = x @ w + b, row-tiled with a megacore-parallel grid."""
    n, e = x.shape
    f = w_bf16.shape[1]
    tm = _pick_tile(n)
    return pl.pallas_call(
        _dense_kernel,
        grid=(n // tm,),
        in_specs=[
            pl.BlockSpec((tm, e), lambda i: (i, 0)),
            pl.BlockSpec((e, f), lambda i: (0, 0)),
            pl.BlockSpec((1, f), lambda i: (0, 0)),
        ],
        out_specs=pl.BlockSpec((tm, f), lambda i: (i, 0)),
        out_shape=jax.ShapeDtypeStruct((n, f), out_dtype),
        compiler_params=pltpu.CompilerParams(
            dimension_semantics=("parallel",),
            vmem_limit_bytes=_VMEM_LIMIT_BYTES),
    )(x, w_bf16, b.reshape(1, f))


# ----------------------------------------------------------------------------
# Fused k/v/e/f projection kernel (keeps k_p / v_p in VMEM for the e/f matmuls)
# ----------------------------------------------------------------------------

def _kvef_proj_kernel(k_ref, v_ref, wk_ref, bk_ref, wv_ref, bv_ref,
                      we_ref, be_ref, wf_ref, bf_ref,
                      kp_ref, vp_ref, ep_ref, fp_ref):
    kb = k_ref[...].astype(jnp.bfloat16)
    vb = v_ref[...].astype(jnp.bfloat16)
    kp = jnp.dot(kb, wk_ref[...], preferred_element_type=jnp.float32) + bk_ref[...]
    vp = jnp.dot(vb, wv_ref[...], preferred_element_type=jnp.float32) + bv_ref[...]
    kp_b = kp.astype(jnp.bfloat16)
    vp_b = vp.astype(jnp.bfloat16)
    # e_linear / f_linear consume the k/v projections (the PyTorch module is only
    # self-consistent when H*dim_k == emb_dim; asserted in the wrapper).
    ep = jnp.dot(kp_b, we_ref[...], preferred_element_type=jnp.float32) + be_ref[...]
    fp = jnp.dot(vp_b, wf_ref[...], preferred_element_type=jnp.float32) + bf_ref[...]
    kp_ref[...] = kp_b
    vp_ref[...] = vp_b
    ep_ref[...] = ep.astype(ep_ref.dtype)
    fp_ref[...] = fp.astype(fp_ref.dtype)


def kvef_proj(k2d, v2d, wk, bk, wv, bv, we, be, wf, bf):
    n, e = k2d.shape
    hdk = wk.shape[1]
    hl = we.shape[1]
    tm = _pick_tile(n)

    def rep(shape):
        return pl.BlockSpec(shape, lambda i: (0, 0))

    return pl.pallas_call(
        _kvef_proj_kernel,
        grid=(n // tm,),
        in_specs=[
            pl.BlockSpec((tm, e), lambda i: (i, 0)),
            pl.BlockSpec((tm, e), lambda i: (i, 0)),
            rep(wk.shape), rep((1, hdk)),
            rep(wv.shape), rep((1, hdk)),
            rep(we.shape), rep((1, hl)),
            rep(wf.shape), rep((1, hl)),
        ],
        out_specs=[
            pl.BlockSpec((tm, hdk), lambda i: (i, 0)),
            pl.BlockSpec((tm, hdk), lambda i: (i, 0)),
            pl.BlockSpec((tm, hl), lambda i: (i, 0)),
            pl.BlockSpec((tm, hl), lambda i: (i, 0)),
        ],
        out_shape=[
            jax.ShapeDtypeStruct((n, hdk), jnp.bfloat16),
            jax.ShapeDtypeStruct((n, hdk), jnp.bfloat16),
            jax.ShapeDtypeStruct((n, hl), jnp.bfloat16),
            jax.ShapeDtypeStruct((n, hl), jnp.bfloat16),
        ],
        compiler_params=pltpu.CompilerParams(
            dimension_semantics=("parallel",),
            vmem_limit_bytes=_VMEM_LIMIT_BYTES),
    )(k2d, v2d,
      wk, bk.reshape(1, hdk), wv, bv.reshape(1, hdk),
      we, be.reshape(1, hl), wf, bf.reshape(1, hl))


# ----------------------------------------------------------------------------
# Linformer context kernel: per-head E_h^T K_h and F_h^T V_h, reduced over Skv
# ----------------------------------------------------------------------------

def _linformer_ctx_kernel(k_ref, v_ref, e_ref, f_ref, kctx_ref, vctx_ref,
                          kacc_ref, vacc_ref, *, num_heads, dim_k, lin_dim):
    s = pl.program_id(1)

    @pl.when(s == 0)
    def _():
        kacc_ref[...] = jnp.zeros_like(kacc_ref)
        vacc_ref[...] = jnp.zeros_like(vacc_ref)

    k = k_ref[...]          # (tskv, H*dk)  bf16
    v = v_ref[...]          # (tskv, H*dk)  bf16
    e = e_ref[...]          # (tskv, H*L)   bf16
    f = f_ref[...]          # (tskv, H*L)   bf16
    contract_seq = (((0,), (0,)), ((), ()))   # contract the sequence axis
    for h in range(num_heads):
        dsl = slice(h * dim_k, (h + 1) * dim_k)
        lsl = slice(h * lin_dim, (h + 1) * lin_dim)
        kacc_ref[h] += lax.dot_general(e[:, lsl], k[:, dsl], contract_seq,
                                       preferred_element_type=jnp.float32)   # (L, dk)
        vacc_ref[h] += lax.dot_general(f[:, lsl], v[:, dsl], contract_seq,
                                       preferred_element_type=jnp.float32)   # (L, dk)

    @pl.when(s == pl.num_programs(1) - 1)
    def _():
        kctx_ref[...] = kacc_ref[...].astype(kctx_ref.dtype)
        vctx_ref[...] = vacc_ref[...].astype(vctx_ref.dtype)


def _run_linformer_context(k3, v3, e3, f3, num_heads, dim_k, lin_dim):
    B, Skv, HDK = k3.shape
    HL = num_heads * lin_dim
    tskv = _pick_tile(Skv)
    kern = functools.partial(_linformer_ctx_kernel, num_heads=num_heads,
                             dim_k=dim_k, lin_dim=lin_dim)
    return pl.pallas_call(
        kern,
        grid=(B, Skv // tskv),
        in_specs=[
            pl.BlockSpec((None, tskv, HDK), lambda b, s: (b, s, 0)),
            pl.BlockSpec((None, tskv, HDK), lambda b, s: (b, s, 0)),
            pl.BlockSpec((None, tskv, HL), lambda b, s: (b, s, 0)),
            pl.BlockSpec((None, tskv, HL), lambda b, s: (b, s, 0)),
        ],
        out_specs=[
            pl.BlockSpec((None, num_heads, lin_dim, dim_k), lambda b, s: (b, 0, 0, 0)),
            pl.BlockSpec((None, num_heads, lin_dim, dim_k), lambda b, s: (b, 0, 0, 0)),
        ],
        out_shape=[
            jax.ShapeDtypeStruct((B, num_heads, lin_dim, dim_k), jnp.bfloat16),
            jax.ShapeDtypeStruct((B, num_heads, lin_dim, dim_k), jnp.bfloat16),
        ],
        scratch_shapes=[
            pltpu.VMEM((num_heads, lin_dim, dim_k), jnp.float32),
            pltpu.VMEM((num_heads, lin_dim, dim_k), jnp.float32),
        ],
        compiler_params=pltpu.CompilerParams(
            dimension_semantics=("parallel", "arbitrary"),
            vmem_limit_bytes=_VMEM_LIMIT_BYTES),
    )(k3, v3, e3, f3)


# ----------------------------------------------------------------------------
# Linformer Q-side kernel: per-head scores/softmax + fused output projection
# ----------------------------------------------------------------------------

def _linformer_attn_kernel(q_ref, kctx_ref, vctx_ref, wo_ref, bo_ref,
                           o_ref, s_ref, *, num_heads, dim_k, lin_dim, scale):
    q = q_ref[...]            # (tq, H*dk)  bf16
    wo = wo_ref[...]          # (H*dk, E)   bf16
    contract_feat = (((1,), (1,)), ((), ()))   # contract dk of both operands
    acc = jnp.zeros(o_ref.shape, jnp.float32)  # (tq, E) fused-projection accumulator
    for h in range(num_heads):
        dsl = slice(h * dim_k, (h + 1) * dim_k)
        q_h = q[:, dsl]                         # (tq, dk)
        kctx_h = kctx_ref[h]                    # (L, dk)  bf16
        vctx_h = vctx_ref[h]                    # (L, dk)  bf16
        # scores_h = Q_h @ (E_h^T K_h)^T / sqrt(dk)
        s_h = lax.dot_general(q_h, kctx_h, contract_feat,
                              preferred_element_type=jnp.float32) * scale   # (tq, L)
        s_ref[h] = s_h.astype(s_ref.dtype)      # write scores in (H, tq, L) layout
        # Per-head numerically stable softmax; approx reciprocal uses the EUP slot
        # (inference-grade precision; ~1e-3 normalization error).
        m = jnp.max(s_h, axis=-1, keepdims=True)
        p = jnp.exp(s_h - m)
        soft = p * pl.reciprocal(jnp.sum(p, axis=-1, keepdims=True), approx=True)
        # attn_h = soft_h @ (F_h^T V_h); fold the output projection in directly.
        attn_h = jnp.dot(soft.astype(jnp.bfloat16), vctx_h,
                         preferred_element_type=jnp.float32)                # (tq, dk)
        acc = acc + jnp.dot(attn_h.astype(jnp.bfloat16), wo[dsl, :],
                            preferred_element_type=jnp.float32)             # (tq, E)
    o_ref[...] = (acc + bo_ref[...]).astype(o_ref.dtype)


def _run_linformer_attention(q3, kctx, vctx, wo, bo, num_heads, dim_k, lin_dim,
                             out_dtype):
    B, Sq, HDK = q3.shape
    E = wo.shape[1]
    tq = _pick_tile(Sq)
    scale = 1.0 / math.sqrt(dim_k)
    kern = functools.partial(_linformer_attn_kernel, num_heads=num_heads,
                             dim_k=dim_k, lin_dim=lin_dim, scale=scale)
    return pl.pallas_call(
        kern,
        grid=(B, Sq // tq),
        in_specs=[
            pl.BlockSpec((None, tq, HDK), lambda b, i: (b, i, 0)),
            pl.BlockSpec((None, num_heads, lin_dim, dim_k), lambda b, i: (b, 0, 0, 0)),
            pl.BlockSpec((None, num_heads, lin_dim, dim_k), lambda b, i: (b, 0, 0, 0)),
            pl.BlockSpec((HDK, E), lambda b, i: (0, 0)),
            pl.BlockSpec((1, E), lambda b, i: (0, 0)),
        ],
        out_specs=[
            pl.BlockSpec((None, tq, E), lambda b, i: (b, i, 0)),
            pl.BlockSpec((None, num_heads, tq, lin_dim), lambda b, i: (b, 0, i, 0)),
        ],
        out_shape=[
            jax.ShapeDtypeStruct((B, Sq, E), out_dtype),
            jax.ShapeDtypeStruct((B, num_heads, Sq, lin_dim), jnp.float32),
        ],
        compiler_params=pltpu.CompilerParams(
            dimension_semantics=("parallel", "parallel"),
            vmem_limit_bytes=_VMEM_LIMIT_BYTES),
    )(q3, kctx, vctx, wo, bo.reshape(1, E))


# ----------------------------------------------------------------------------
# Standard attention fallback (used when linear_dim >= kv sequence length)
# ----------------------------------------------------------------------------

def _basic_attn_kernel(q_ref, k_ref, v_ref, wo_ref, bo_ref, o_ref, s_ref,
                       *, num_heads, dim_k, scale):
    q = q_ref[...]            # (tq,  H*dk) bf16
    k = k_ref[...]            # (Skv, H*dk) bf16
    v = v_ref[...]            # (Skv, H*dk) bf16
    wo = wo_ref[...]          # (H*dk, E)   bf16
    contract_feat = (((1,), (1,)), ((), ()))
    acc = jnp.zeros(o_ref.shape, jnp.float32)
    for h in range(num_heads):
        dsl = slice(h * dim_k, (h + 1) * dim_k)
        s_h = lax.dot_general(q[:, dsl], k[:, dsl], contract_feat,
                              preferred_element_type=jnp.float32) * scale   # (tq, Skv)
        s_ref[h] = s_h.astype(s_ref.dtype)
        m = jnp.max(s_h, axis=-1, keepdims=True)
        p = jnp.exp(s_h - m)
        soft = p * pl.reciprocal(jnp.sum(p, axis=-1, keepdims=True), approx=True)
        attn_h = jnp.dot(soft.astype(jnp.bfloat16), v[:, dsl],
                         preferred_element_type=jnp.float32)                # (tq, dk)
        acc = acc + jnp.dot(attn_h.astype(jnp.bfloat16), wo[dsl, :],
                            preferred_element_type=jnp.float32)             # (tq, E)
    o_ref[...] = (acc + bo_ref[...]).astype(o_ref.dtype)


def _run_basic_attention(q3, k3, v3, wo, bo, num_heads, dim_k, out_dtype):
    B, Sq, HDK = q3.shape
    Skv = k3.shape[1]
    E = wo.shape[1]
    tq = _pick_tile(Sq)
    scale = 1.0 / math.sqrt(dim_k)
    kern = functools.partial(_basic_attn_kernel, num_heads=num_heads,
                             dim_k=dim_k, scale=scale)
    return pl.pallas_call(
        kern,
        grid=(B, Sq // tq),
        in_specs=[
            pl.BlockSpec((None, tq, HDK), lambda b, i: (b, i, 0)),
            pl.BlockSpec((None, Skv, HDK), lambda b, i: (b, 0, 0)),
            pl.BlockSpec((None, Skv, HDK), lambda b, i: (b, 0, 0)),
            pl.BlockSpec((HDK, E), lambda b, i: (0, 0)),
            pl.BlockSpec((1, E), lambda b, i: (0, 0)),
        ],
        out_specs=[
            pl.BlockSpec((None, tq, E), lambda b, i: (b, i, 0)),
            pl.BlockSpec((None, num_heads, tq, Skv), lambda b, i: (b, 0, i, 0)),
        ],
        out_shape=[
            jax.ShapeDtypeStruct((B, Sq, E), out_dtype),
            jax.ShapeDtypeStruct((B, num_heads, Sq, Skv), jnp.float32),
        ],
        compiler_params=pltpu.CompilerParams(
            dimension_semantics=("parallel", "parallel"),
            vmem_limit_bytes=_VMEM_LIMIT_BYTES),
    )(q3, k3, v3, wo, bo.reshape(1, E))


# ----------------------------------------------------------------------------
# Module wrapper (parameter setup + glue reshapes in plain JAX)
# ----------------------------------------------------------------------------

def init_params(key, num_heads, emb_dim, linear_dim, dim_k):
    """Deterministic PyTorch-nn.Linear-style init (uniform(-1/sqrt(in), 1/sqrt(in)))."""
    def linear(k, fan_in, fan_out):
        kw, kb = jax.random.split(k)
        bound = 1.0 / math.sqrt(fan_in)
        w = jax.random.uniform(kw, (fan_in, fan_out), jnp.float32, -bound, bound)
        b = jax.random.uniform(kb, (fan_out,), jnp.float32, -bound, bound)
        return w, b

    keys = jax.random.split(key, 6)
    p = {}
    p["Wq"], p["bq"] = linear(keys[0], emb_dim, dim_k * num_heads)
    p["Wk"], p["bk"] = linear(keys[1], emb_dim, dim_k * num_heads)
    p["Wv"], p["bv"] = linear(keys[2], emb_dim, dim_k * num_heads)
    # e_linear / f_linear consume the k_linear / v_linear outputs (dim_k*H == emb_dim).
    p["We"], p["be"] = linear(keys[3], emb_dim, linear_dim * num_heads)
    p["Wf"], p["bf"] = linear(keys[4], emb_dim, linear_dim * num_heads)
    p["Wo"], p["bo"] = linear(keys[5], dim_k * num_heads, emb_dim)
    return p


def linformer_mha_forward(params, q, k, v, num_heads, linear_dim, dim_k):
    B, Sq, E = q.shape
    Skv = k.shape[1]
    HDK = num_heads * dim_k
    HL = num_heads * linear_dim
    # The PyTorch module feeds k_linear/v_linear outputs (width H*dim_k) into
    # e_linear/f_linear (declared with emb_dim inputs); it is only self-consistent
    # when H*dim_k == emb_dim.
    assert HDK == E, "LinformerMultiHeadAttention requires num_heads * dim_k == emb_dim"

    bf = jnp.bfloat16
    wq = params["Wq"].astype(bf)
    wk = params["Wk"].astype(bf)
    wv = params["Wv"].astype(bf)
    we = params["We"].astype(bf)
    wf = params["Wf"].astype(bf)
    wo = params["Wo"].astype(bf)

    # Projections: one tiled dense for q, one fused kernel for k/v/e/f.
    q_p = dense(q.reshape(-1, E), wq, params["bq"])                   # (B*Sq, H*dk) bf16
    k_p, v_p, e_p, f_p = kvef_proj(k.reshape(-1, E), v.reshape(-1, E),
                                   wk, params["bk"], wv, params["bv"],
                                   we, params["be"], wf, params["bf"])

    # Keep (batch, seq, features) layout; head split happens inside the kernels.
    q3 = q_p.reshape(B, Sq, HDK)
    k3 = k_p.reshape(B, Skv, HDK)
    v3 = v_p.reshape(B, Skv, HDK)
    e3 = e_p.reshape(B, Skv, HL)
    f3 = f_p.reshape(B, Skv, HL)

    out_dtype = q.dtype
    if linear_dim < Skv:   # same static branch as the PyTorch forward
        kctx, vctx = _run_linformer_context(k3, v3, e3, f3,
                                            num_heads, dim_k, linear_dim)
        output, scores = _run_linformer_attention(q3, kctx, vctx, wo, params["bo"],
                                                  num_heads, dim_k, linear_dim,
                                                  out_dtype)
    else:
        output, scores = _run_basic_attention(q3, k3, v3, wo, params["bo"],
                                              num_heads, dim_k, out_dtype)
    return output, scores


# ----------------------------------------------------------------------------
# Pure-JAX reference (f32, for correctness check)
# ----------------------------------------------------------------------------

def reference_forward(params, q, k, v, num_heads, linear_dim, dim_k):
    B, Sq, E = q.shape
    Skv = k.shape[1]
    q_p = q @ params["Wq"] + params["bq"]
    k_p = k @ params["Wk"] + params["bk"]
    v_p = v @ params["Wv"] + params["bv"]
    e_p = k_p @ params["We"] + params["be"]
    f_p = v_p @ params["Wf"] + params["bf"]
    qh = q_p.reshape(B, Sq, num_heads, dim_k).transpose(0, 2, 1, 3)
    kh = k_p.reshape(B, Skv, num_heads, dim_k).transpose(0, 2, 1, 3)
    vh = v_p.reshape(B, Skv, num_heads, dim_k).transpose(0, 2, 1, 3)
    eh = e_p.reshape(B, Skv, num_heads, linear_dim).transpose(0, 2, 1, 3)
    fh = f_p.reshape(B, Skv, num_heads, linear_dim).transpose(0, 2, 1, 3)
    if linear_dim < Skv:
        kp = jnp.einsum("bhsl,bhsd->bhld", eh, kh)
        scores = jnp.einsum("bhqd,bhld->bhql", qh, kp) / math.sqrt(dim_k)
        soft = jax.nn.softmax(scores, axis=-1)
        vp = jnp.einsum("bhsl,bhsd->bhld", fh, vh)
        attn = jnp.einsum("bhql,bhld->bhqd", soft, vp)
    else:
        scores = jnp.einsum("bhqd,bhkd->bhqk", qh, kh) / math.sqrt(dim_k)
        soft = jax.nn.softmax(scores, axis=-1)
        attn = jnp.einsum("bhqk,bhkd->bhqd", soft, vh)
    concat = attn.transpose(0, 2, 1, 3).reshape(B, Sq, dim_k * num_heads)
    return concat @ params["Wo"] + params["bo"], scores


# ----------------------------------------------------------------------------
# Main
# ----------------------------------------------------------------------------

def _rel_err(a, b):
    a = jnp.asarray(a, jnp.float32)
    b = jnp.asarray(b, jnp.float32)
    return float(jnp.linalg.norm(a - b) / (jnp.linalg.norm(b) + 1e-12))


def _check_config(seed, batch, seq, num_heads, emb_dim, linear_dim,
                  score_tol=3e-2, out_tol=3e-2):
    dim_k = emb_dim // num_heads
    key = jax.random.PRNGKey(seed)
    kp, kq, kk, kv = jax.random.split(key, 4)
    params = init_params(kp, num_heads, emb_dim, linear_dim, dim_k)
    q = jax.random.normal(kq, (batch, seq, emb_dim), jnp.float32)
    k = jax.random.normal(kk, (batch, seq, emb_dim), jnp.float32)
    v = jax.random.normal(kv, (batch, seq, emb_dim), jnp.float32)

    out, scores = linformer_mha_forward(params, q, k, v, num_heads, linear_dim, dim_k)
    out = jax.block_until_ready(out)
    scores = jax.block_until_ready(scores)

    ref_out, ref_scores = reference_forward(params, q, k, v, num_heads, linear_dim, dim_k)
    assert out.shape == (batch, seq, emb_dim)
    if linear_dim < seq:
        assert scores.shape == (batch, num_heads, seq, linear_dim)
    else:
        assert scores.shape == (batch, num_heads, seq, seq)
    # bf16 MXU operands + EUP approx reciprocal -> compare with relative L2 error.
    s_err = _rel_err(scores, ref_scores)
    o_err = _rel_err(out, ref_out)
    assert s_err < score_tol, f"scores rel err {s_err}"
    assert o_err < out_tol, f"output rel err {o_err}"


if __name__ == "__main__":
    # 1) Small config (Linformer path: linear_dim 8 < kv length 16).
    _check_config(seed=0, batch=2, seq=16, num_heads=4, emb_dim=32, linear_dim=8)
    # 2) Lane-dense config exercising Sq/Skv tiling (per-head dims of 128).
    #    Longer Skv amplifies bf16 score error through the softmax -> looser out tol.
    _check_config(seed=1, batch=1, seq=1024, num_heads=2, emb_dim=256, linear_dim=128,
                  score_tol=3e-2, out_tol=7e-2)
    # 3) Basic-attention fallback (linear_dim 16 >= kv length 16).
    _check_config(seed=2, batch=2, seq=16, num_heads=4, emb_dim=32, linear_dim=16)

    print("KERNEL_OK")
</pallas_src>

<mosaic_0001>
module attributes {stable_mosaic.version = 11 : i64} {
  func.func @_dense_kernel(%arg0: i32, %arg1: memref<32x32xf32, #tpu.memory_space<vmem>>, %arg2: memref<32x32xbf16, #tpu.memory_space<vmem>>, %arg3: memref<1x32xf32, #tpu.memory_space<vmem>>, %arg4: memref<32x32xbf16, #tpu.memory_space<vmem>>) attributes {dimension_semantics = [#tpu.dimension_semantics<parallel>], iteration_bounds = array<i64: 1>, scalar_prefetch = 0 : i64, scratch_operands = 0 : i64, tpu.core_type = #tpu.core_type<tc>, window_params = [{transform_indices = @transform_0, window_bounds = array<i64: 32, 32>}, {pipeline_mode = #tpu.pipeline_mode<synchronous>, transform_indices = @transform_1, window_bounds = array<i64: 32, 32>}, {pipeline_mode = #tpu.pipeline_mode<synchronous>, transform_indices = @transform_2, window_bounds = array<i64: 1, 32>}, {transform_indices = @transform_3, window_bounds = array<i64: 32, 32>}]} {
    %c0 = arith.constant 0 : index
    %c0_0 = arith.constant 0 : index
    %0 = vector.load %arg1[%c0, %c0_0] : memref<32x32xf32, #tpu.memory_space<vmem>>, vector<32x32xf32>
    %1 = arith.truncf %0 : vector<32x32xf32> to vector<32x32xbf16>
    %c0_1 = arith.constant 0 : index
    %c0_2 = arith.constant 0 : index
    %2 = vector.load %arg2[%c0_1, %c0_2] : memref<32x32xbf16, #tpu.memory_space<vmem>>, vector<32x32xbf16>
    %cst = arith.constant dense<0.000000e+00> : vector<32x32xf32>
    %3 = tpu.matmul %1, %2, %cst {dimension_numbers = #tpu.dot_dimension_numbers<[1], [0], [0], [1], [0, 0, 1, 1], [], []>} : vector<32x32xbf16>, vector<32x32xbf16>, vector<32x32xf32> -> vector<32x32xf32>
    %c0_3 = arith.constant 0 : index
    %c0_4 = arith.constant 0 : index
    %4 = vector.load %arg3[%c0_3, %c0_4] : memref<1x32xf32, #tpu.memory_space<vmem>>, vector<1x32xf32>
    %5 = vector.broadcast %4 : vector<1x32xf32> to vector<32x32xf32>
    %6 = arith.addf %3, %5 : vector<32x32xf32>
    %7 = arith.truncf %6 : vector<32x32xf32> to vector<32x32xbf16>
    %c0_5 = arith.constant 0 : index
    %c0_6 = arith.constant 0 : index
    %8 = vector.load %arg4[%c0_5, %c0_6] : memref<32x32xbf16, #tpu.memory_space<vmem>>, vector<32x32xbf16>
    tpu.vector_store %arg4[%c0_5, %c0_6], %7 {strides = array<i32>} : memref<32x32xbf16, #tpu.memory_space<vmem>>, vector<32x32xbf16>,
    return
  }
  func.func @transform_0(%arg0: i32) -> (i32, i32) {
    %c0_i32 = arith.constant 0 : i32
    %c0_i32_0 = arith.constant 0 : i32
    return %arg0, %c0_i32 : i32, i32
  }
  func.func @transform_1(%arg0: i32) -> (i32, i32) {
    %c0_i32 = arith.constant 0 : i32
    %c0_i32_0 = arith.constant 0 : i32
    %c0_i32_1 = arith.constant 0 : i32
    return %c0_i32, %c0_i32_0 : i32, i32
  }
  func.func @transform_2(%arg0: i32) -> (i32, i32) {
    %c0_i32 = arith.constant 0 : i32
    %c0_i32_0 = arith.constant 0 : i32
    %c0_i32_1 = arith.constant 0 : i32
    return %c0_i32, %c0_i32_0 : i32, i32
  }
  func.func @transform_3(%arg0: i32) -> (i32, i32) {
    %c0_i32 = arith.constant 0 : i32
    %c0_i32_0 = arith.constant 0 : i32
    return %arg0, %c0_i32 : i32, i32
  }
}

</mosaic_0001>

<llo_original>
// kernel: tpu_custom_call.1
$region0: #{tpu_custom_call.1}
  #allocation0 [shape = 'u32[]', space=smem, size = 0x4, offset = 0x4, fixed_abs, tag = 'smem constant byte address 0x4 - core index']
  #allocation1 [shape = 'u32[144,128]{1,0:T(1,128)}', space=vmem, size = 0x12000, scoped, tag = 'internal scratch']
  %s0 = inlined_call_operand.hbm [shape: f32[32,32], index: 0, kind: input, shape index: {}]
  %s1 = inlined_call_operand.hbm [shape: bf16[32,32], index: 1, kind: input, shape index: {}]
  %s2 = inlined_call_operand.vmem [shape: f32[1,32], index: 2, kind: input, shape index: {}]
  %s3 = inlined_call_operand.hbm [shape: bf16[32,32], index: 3, kind: output, shape index: {}]
  %s4 = sld [smem:[#allocation0]]
  $region30: #{tpu_custom_call.1} parent=0
    _
  %s6 = ssub.s32 1, %s4
  %s7 = scalar_select 0, %s6, %s4
  $region1: #{tpu_custom_call.1} parent=0
    #allocation2 [shape = 'u8[16384]{0}', space=vmem, size = 0x4000, scoped, tag = 'input window, operand 0, single buffered']
    #allocation3 [shape = 's32[1]{0}', space=sflag, size = 0x4, scoped, tag = 'scoped memory for tpu_custom_call.1']
    #allocation4 [shape = 's32[1]{0}', space=sflag, size = 0x4, scoped, tag = 'scoped memory for tpu_custom_call.1']
    #allocation5 [shape = 'u8[8192]{0}', space=vmem, size = 0x2000, scoped, tag = 'input window, operand 1, single buffered']
    #allocation6 [shape = 's32[1]{0}', space=sflag, size = 0x4, scoped, tag = 'scoped memory for tpu_custom_call.1']
    #allocation7 [shape = 'u8[8192]{0}', space=vmem, size = 0x2000, scoped, tag = 'output window, operand 0, single buffered']
    %8 = vsyncpa [#allocation3], 0
    %9 = vsyncpa [#allocation6], 0
    %10 = vsyncpa [#allocation4], 0
    // Predicated region
    $region2: #{tpu_custom_call.1} parent=1 // pred_check
      _
    $region3: #{tpu_custom_call.1} parent=1 // pred_check_branch
      %12 = sbr.rel (0) target = $region5
    $region4: #{tpu_custom_call.1} parent=1 // pred_region
      %s14 = ssub.s32 512, 512
      %15 = vsyncadd [#allocation3], %s14
      %s16 = sshll.u32 [#allocation2], 4
      %s17 = int_to_ptr.vmem [resolvable:$true] %s16
      %22 = dma.hbm_to_vmem [thread:$0]  %s0, 512, %s17, [#allocation3], 128, 128, 8
    $region5: #{tpu_custom_call.1} parent=1 // pred_fallthru
      _
    // Predicated region
    $region6: #{tpu_custom_call.1} parent=1 // pred_check
      _
    $region7: #{tpu_custom_call.1} parent=1 // pred_check_branch
      %24 = sbr.rel (0) target = $region9
    $region8: #{tpu_custom_call.1} parent=1 // pred_region
      %s26 = ssub.s32 256, 256
      %27 = vsyncadd [#allocation6], %s26
      %s28 = sshll.u32 [#allocation5], 4
      %s29 = int_to_ptr.vmem [resolvable:$true] %s28
      %34 = dma.hbm_to_vmem [thread:$0]  %s1, 256, %s29, [#allocation6], 64, 64, 4
    $region9: #{tpu_custom_call.1} parent=1 // pred_fallthru
      _
    // Predicated region
    $region10: #{tpu_custom_call.1} parent=1 // pred_check
      _
    $region11: #{tpu_custom_call.1} parent=1 // pred_check_branch
      %36 = sbr.rel (0) target = $region13
    $region12: #{tpu_custom_call.1} parent=1 // pred_region
      _
    $region13: #{tpu_custom_call.1} parent=1 // pred_fallthru
      _
    // Predicated region
    $region14: #{tpu_custom_call.1} parent=1 // pred_check
      _
    $region15: #{tpu_custom_call.1} parent=1 // pred_check_branch
      %38 = sbr.rel (0) target = $region17
    $region16: #{tpu_custom_call.1} parent=1 // pred_region
      %39 = dma.done [#allocation3], 512
    $region17: #{tpu_custom_call.1} parent=1 // pred_fallthru
      _
    // Predicated region
    $region18: #{tpu_custom_call.1} parent=1 // pred_check
      _
    $region19: #{tpu_custom_call.1} parent=1 // pred_check_branch
      %41 = sbr.rel (0) target = $region21
    $region20: #{tpu_custom_call.1} parent=1 // pred_region
      %42 = dma.done [#allocation6], 256
    $region21: #{tpu_custom_call.1} parent=1 // pred_fallthru
      _
    %v44 = vld [vmem:[#allocation2] sm:$0xff]
    %v45 = vld [vmem:[#allocation2 + $0x8] sm:$0xff]
    %v46 = vld [vmem:[#allocation2 + $0x10] sm:$0xff]
    %v47 = vld [vmem:[#allocation2 + $0x18] sm:$0xff]
    %v48 = vpack.c.bf16 %v45, %v44
    %v49 = vpack.c.bf16 %v47, %v46
    %v50 = vld [vmem:[#allocation5] sm:$0xf]
    %v51 = vld [vmem:[#allocation5 + $0x4] sm:$0xf]
    %v52 = vld [vmem:[#allocation5 + $0x8] sm:$0xf]
    %v53 = vld [vmem:[#allocation5 + $0xc] sm:$0xf]
    %v54 = vld [vmem:[%s2] sm:$0x1]
    %v56 = vlaneseq
    %v57 = vshrl.u32 %v56, 7
    %v58 = vsub.s32 0, %v57
    %v59 = vrot.slane %v54, %v58
    %v65 = vunpack.c.l.b16 %v50
    %v66 = vunpack.c.l.b16 %v51
    %v67 = vunpack.c.l.b16 %v52
    %v68 = vunpack.c.l.b16 %v53
    %v69 = vpack.c.b16 %v66, %v65
    %v70 = vpack.c.b16 %v68, %v67
    %vm73 = vcmask 261120
    %v75 = vsel %vm73, %v48, 0
    %v78 = vsel %vm73, %v49, 0
    %80 = vmatprep.subr.bf16.mxu0 0
    %81 = vmatpush1.bf16.msra.mxu0 %v69
    %82 = vmatprep.subr.bf16.mxu0 0
    %83 = vmatpush1.bf16.msra.mxu0 %v70
    %84 = vmatprep.subr.bf16.mxu0 0
    %85 = vmatpush1.bf16.msra.mxu0 0
    %86 = vmatprep.subr.bf16.mxu0 0
    %87 = vmatpush1.bf16.msra.mxu0 0
    %88 = vmatprep.subr.bf16.mxu0 0
    %89 = vmatpush1.bf16.msra.mxu0 0
    %90 = vmatprep.subr.bf16.mxu0 0
    %91 = vmatpush1.bf16.msra.mxu0 0
    %92 = vmatprep.subr.bf16.mxu0 0
    %93 = vmatpush1.bf16.msra.mxu0 0
    %94 = vmatprep.subr.bf16.mxu0 0
    %95 = vmatpush1.bf16.msra.mxu0 0
    %96 = vmatprep.subr.bf16.mxu0 0
    %97 = vmatpush1.bf16.msra.mxu0 0
    %98 = vmatprep.subr.bf16.mxu0 0
    %99 = vmatpush1.bf16.msra.mxu0 0
    %100 = vmatprep.subr.bf16.mxu0 0
    %101 = vmatpush1.bf16.msra.mxu0 0
    %102 = vmatprep.subr.bf16.mxu0 0
    %103 = vmatpush1.bf16.msra.mxu0 0
    %104 = vmatprep.subr.bf16.mxu0 0
    %105 = vmatpush1.bf16.msra.mxu0 0
    %106 = vmatprep.subr.bf16.mxu0 0
    %107 = vmatpush1.bf16.msra.mxu0 0
    %108 = vmatprep.subr.bf16.mxu0 0
    %109 = vmatpush1.bf16.msra.mxu0 0
    %110 = vmatprep.subr.bf16.mxu0 0
    %111 = vmatpush1.bf16.msra.mxu0 0
    %112 = vmatprep.mubr.bf16.mxu0 0
    %113 = vmatmul.mubr.bf16.gmra.mrb[0].mxu0 %v75
    %v114 = vpop.f32.mrb[0].mxu0
    %v115 = vadd.f32 %v59, %v114
    %v116 = vpop.f32.mrb[0].mxu0
    %v117 = vpop.f32.mrb[0].mxu0
    %v118 = vadd.f32 %v59, %v117
    %v119 = vpop.f32.mrb[0].mxu0
    %120 = vmatprep.mubr.bf16.mxu0 0
    %121 = vmatmul.mubr.bf16.gmra.mrb[0].mxu0 %v78
    %v122 = vpop.f32.mrb[0].mxu0
    %v123 = vadd.f32 %v59, %v122
    %v124 = vpop.f32.mrb[0].mxu0
    %v125 = vpop.f32.mrb[0].mxu0
    %v126 = vadd.f32 %v59, %v125
    %v127 = vpop.f32.mrb[0].mxu0
    %128 = vdwg.mxu0
    %v129 = vpack.c.bf16 %v118, %v115
    %v130 = vpack.c.bf16 %v126, %v123
    %v133 = vunpack.c.l.b16 %v129
    %v134 = vunpack.c.h.b16 %v129
    %v135 = vunpack.c.l.b16 %v130
    %v136 = vunpack.c.h.b16 %v130
    %v137 = vpack.c.b16 %v133, %v133
    %v138 = vpack.c.b16 %v134, %v134
    %v139 = vpack.c.b16 %v135, %v135
    %v140 = vpack.c.b16 %v136, %v136
    %vm145 = vcmask 257024
    %146 = vst.msk [vmem:[#allocation7] sm:$0xf] %vm145, %v137
    %147 = vst.msk [vmem:[#allocation7 + $0x4] sm:$0xf] %vm145, %v138
    %148 = vst.msk [vmem:[#allocation7 + $0x8] sm:$0xf] %vm145, %v139
    %149 = vst.msk [vmem:[#allocation7 + $0xc] sm:$0xf] %vm145, %v140
    // Predicated region
    $region22: #{tpu_custom_call.1} parent=1 // pred_check
      _
    $region23: #{tpu_custom_call.1} parent=1 // pred_check_branch
      %151 = sbr.rel (0) target = $region25
    $region24: #{tpu_custom_call.1} parent=1 // pred_region
      %s153 = ssub.s32 256, 256
      %154 = vsyncadd [#allocation4], %s153
      %s155 = sshll.u32 [#allocation7], 4
      %s156 = int_to_ptr.vmem [resolvable:$true] %s155
      %161 = dma.vmem_to_hbm [thread:$0]  %s156, 256, %s3, [#allocation4], 64, 64, 4
    $region25: #{tpu_custom_call.1} parent=1 // pred_fallthru
      _
    // Predicated region
    $region26: #{tpu_custom_call.1} parent=1 // pred_check
      _
    $region27: #{tpu_custom_call.1} parent=1 // pred_check_branch
      %163 = sbr.rel (0) target = $region29
    $region28: #{tpu_custom_call.1} parent=1 // pred_region
      %164 = dma.done [#allocation4], 256
    $region29: #{tpu_custom_call.1} parent=1 // pred_fallthru
      _
    %165 = vsyncpa [#allocation3], 1
    %166 = vsyncpa [#allocation6], 1
    %167 = vsyncpa [#allocation4], 1

</llo_original>
